<compile_context>
chip_gen: v7x
topology: tpu7x:2x2x1
jax: 0.10.0
libtpu: 0.0.40
codegen_flags: <defaults>
</compile_context>

<pallas_src>
import functools
import math

import jax
import jax.numpy as jnp
from jax.experimental import pallas as pl
from jax.experimental.pallas import tpu as pltpu


def _round_up(a, b):
    return (a + b - 1) // b * b


_COMPILER_PARAMS = pltpu.CompilerParams(
    dimension_semantics=("parallel",),
    vmem_limit_bytes=32 * 1024 * 1024,
)

_TARGET_BLOCK_BYTES = 4 << 20   # ~4 MiB output tile (v5e HBM-write roofline sweet spot)
_MIN_GRID_STEPS = 4             # keep >=4 steps so v7x's two TCs / the pipeline stay fed

# Set to jax.lax.Precision.HIGHEST if a bit-exact f32 Linear is required; the
# default lets the MXU use its fastest f32 path.
_MATMUL_PRECISION = None


def _bf16_fast_sin_ok():
    # v6e / v7x have a bf16 VPU/EUP; v5e and older do not (bf16 sin would
    # deoptimize into scalarized casts there).
    try:
        kind = jax.devices()[0].device_kind.lower()
    except Exception:
        return False
    return not any(t in kind for t in ("v2", "v3", "v4", "v5"))


def _pick_rows(n_rows, bytes_per_row):
    """Rows per block: multiple of 8 (or the full dim), ~4 MiB, >= 4 grid steps."""
    if n_rows <= 8:
        return n_rows                              # single block spanning the full dim
    cap = max(8, (_TARGET_BLOCK_BYTES // max(bytes_per_row, 1)) // 8 * 8)
    tg = max(8, min(cap, _round_up(n_rows, 8)))
    if _round_up(n_rows, 8) >= _MIN_GRID_STEPS * 8:
        # shrink the tile (never below 8 rows) so the parallel axis has >= 4 steps
        tg = min(tg, max(8, _round_up(pl.cdiv(n_rows, _MIN_GRID_STEPS), 8)))
    return tg


# --------------------------------------------------------------------------
# Packed path: d_model % 128 != 0.  W time steps are packed per output row so
# the stored row is W*D lanes (a multiple of 128 -> always-unmasked vst), and
# the Linear is a (tg, W) @ (W, W*D) matmul on the MXU.
# --------------------------------------------------------------------------
def _packed_kernel(x_ref, w2_ref, b2_ref, o_ref, *, d_model, bf16_sin):
    # x_ref: (tg, W) input dtype   w2_ref: (W, W*D) f32 = kron(I_W, w)
    # b2_ref: (1, W*D) f32         o_ref: (tg, W*D) out dtype
    x = x_ref[...].astype(jnp.float32)
    # Linear on the MXU; the VPU only does the bias add, mask select and sin.
    y = jnp.dot(x, w2_ref[...],
                preferred_element_type=jnp.float32,
                precision=_MATMUL_PRECISION) + b2_ref[...]
    # channel 0 of every packed logical row sits at lanes l with l % D == 0;
    # the mask is a single (1, W*D) iota/compare -> negligible VALU work.
    lane = jax.lax.broadcasted_iota(jnp.int32, (1, y.shape[-1]), 1)
    keep_linear = (lane % d_model) == 0
    if bf16_sin:                                   # v6e/v7x + bf16 output only
        y = y.astype(jnp.bfloat16)
    o_ref[...] = jnp.where(keep_linear, y, jnp.sin(y)).astype(o_ref.dtype)


def _packed_path(x_flat, w, b, D, M, out_dtype, bf16_sin):
    base = 128 // math.gcd(D, 128)                 # smallest W with (W*D) % 128 == 0
    max_w = max(base, min(128, (4096 // max(D, 1)) // base * base))
    W = 0
    for k in range(max_w // base, 0, -1):          # largest W dividing M -> no pad copy
        if M % (k * base) == 0:
            W = k * base
            break
    if W == 0:
        # Awkward M only: one extra HBM copy to pad x (and an output slice below).
        W = max_w
        Mp = _round_up(M, W)
        x_flat = jnp.pad(x_flat, (0, Mp - M))
    else:
        Mp = M
    R = Mp // W
    xr = x_flat.reshape(R, W)                      # free row-major view (no copy)

    w2 = jnp.kron(jnp.eye(W, dtype=jnp.float32), w.reshape(1, D))   # (W, W*D)
    b2 = jnp.tile(b, W).reshape(1, W * D)

    # bytes/row: lane-dense output row + the (lane-padded) x row in VMEM
    tg = _pick_rows(R, W * D * jnp.dtype(out_dtype).itemsize + 128 * xr.dtype.itemsize)
    n_steps = pl.cdiv(R, tg)                       # ragged last block is masked by Pallas

    kernel = functools.partial(_packed_kernel, d_model=D, bf16_sin=bf16_sin)
    out = pl.pallas_call(
        kernel,
        out_shape=jax.ShapeDtypeStruct((R, W * D), out_dtype),
        grid=(n_steps,),
        in_specs=[
            pl.BlockSpec((tg, W), lambda i: (i, 0)),
            pl.BlockSpec((W, W * D), lambda i: (0, 0)),
            pl.BlockSpec((1, W * D), lambda i: (0, 0)),
        ],
        out_specs=pl.BlockSpec((tg, W * D), lambda i: (i, 0)),
        compiler_params=_COMPILER_PARAMS,
    )(xr, w2, b2)

    out = out.reshape(Mp, D)                       # free row-major view
    return out[:M] if Mp != M else out


# --------------------------------------------------------------------------
# Direct path: d_model % 128 == 0.  The Linear is a broadcast mul/add (2 VALU
# ops per element, already optimal); single full-width masked-select store.
# The (tg, 1) x block is lane-sparse in VMEM but x traffic is only 1/D of the
# output traffic and the tg cap accounts for its padded footprint.
# --------------------------------------------------------------------------
def _direct_kernel(x_ref, w_ref, b_ref, o_ref, *, bf16_sin):
    # x_ref: (tg, 1)   w_ref/b_ref: (1, D) f32   o_ref: (tg, D), D % 128 == 0
    x = x_ref[...].astype(jnp.float32)
    y = x * w_ref[...] + b_ref[...]
    lane = jax.lax.broadcasted_iota(jnp.int32, (1, y.shape[-1]), 1)
    keep_linear = lane == 0
    if bf16_sin:
        y = y.astype(jnp.bfloat16)
    # one lane-dense store; channel 0 handled by the select, not a second store
    o_ref[...] = jnp.where(keep_linear, y, jnp.sin(y)).astype(o_ref.dtype)


def _direct_path(x_flat, w, b, D, M, out_dtype, bf16_sin):
    x2 = x_flat.reshape(M, 1)                      # free view, original dtype, no pad
    w2 = w.reshape(1, D)
    b2 = b.reshape(1, D)

    tg = _pick_rows(M, D * jnp.dtype(out_dtype).itemsize + 128 * x2.dtype.itemsize)
    n_steps = pl.cdiv(M, tg)                       # ragged last block is masked by Pallas

    kernel = functools.partial(_direct_kernel, bf16_sin=bf16_sin)
    return pl.pallas_call(
        kernel,
        out_shape=jax.ShapeDtypeStruct((M, D), out_dtype),
        grid=(n_steps,),
        in_specs=[
            pl.BlockSpec((tg, 1), lambda i: (i, 0)),
            pl.BlockSpec((1, D), lambda i: (0, 0)),
            pl.BlockSpec((1, D), lambda i: (0, 0)),
        ],
        out_specs=pl.BlockSpec((tg, D), lambda i: (i, 0)),
        compiler_params=_COMPILER_PARAMS,
    )(x2, w2, b2)


# --------------------------------------------------------------------------
# Public wrapper (matches TimeEncoding.forward)
# --------------------------------------------------------------------------
@functools.partial(jax.jit, static_argnames=("bf16_sin",))
def _time_encoding_jit(x, weight, bias, *, bf16_sin):
    B, S, one = x.shape
    assert one == 1
    D = weight.shape[0]
    M = B * S
    out_dtype = x.dtype

    w = weight.astype(jnp.float32).reshape(D)
    b = bias.astype(jnp.float32).reshape(D)
    x_flat = x.reshape(M)                          # original dtype; cast in-kernel

    if D % 128 == 0:
        out2 = _direct_path(x_flat, w, b, D, M, out_dtype, bf16_sin)
    else:
        out2 = _packed_path(x_flat, w, b, D, M, out_dtype, bf16_sin)
    return out2.reshape(B, S, D)


def time_encoding(x, weight, bias, *, bf16_sin=None):
    """TimeEncoding forward.  x: (B, S, 1); weight: (d_model, 1); bias: (d_model,)."""
    if bf16_sin is None:
        bf16_sin = (jnp.dtype(x.dtype) == jnp.dtype(jnp.bfloat16)) and _bf16_fast_sin_ok()
    return _time_encoding_jit(x, weight, bias, bf16_sin=bool(bf16_sin))


def time_encoding_ref(x, weight, bias):
    # Pure-JAX reference mirroring the PyTorch forward (in_features == 1, so the
    # Linear is a broadcast multiply-add), computed in f32.
    y = x.astype(jnp.float32) * weight[:, 0][None, None, :] + bias[None, None, :]
    return jnp.concatenate([y[:, :, 0:1], jnp.sin(y[:, :, 1:])], axis=-1)


if __name__ == "__main__":
    key = jax.random.PRNGKey(0)

    def run_case(B, S, D, x_dtype=jnp.float32, tol=5e-2):
        # Tolerance for the matmul (packed) path covers the possibility that the
        # MXU evaluates the f32 Linear with bf16 passes at default matmul
        # precision; the direct path is exact f32 (tight tol below).
        kx, kw, kb = jax.random.split(jax.random.fold_in(key, B * 131 + S * 7 + D), 3)
        weight = jax.random.normal(kw, (D, 1), dtype=jnp.float32)   # (d_model, 1)
        bias = jax.random.normal(kb, (D,), dtype=jnp.float32)       # (d_model,)
        x = jax.random.normal(kx, (B, S, 1), dtype=jnp.float32).astype(x_dtype)

        out = jax.block_until_ready(time_encoding(x, weight, bias))
        assert out.shape == (B, S, D)
        assert out.dtype == x_dtype
        ref = time_encoding_ref(x, weight, bias)
        err = float(jnp.max(jnp.abs(out.astype(jnp.float32) - ref)))
        assert err <= tol, (B, S, D, str(x_dtype), err)

    # packed / MXU path (d_model not a multiple of 128)
    run_case(2, 8, 32)                       # tiny: W=16, single block, no pad copy
    run_case(8, 375, 32)                     # grid > 1 with a ragged last block
    run_case(2, 64, 48)                      # 128 % D != 0, still lane-dense stores
    # direct path (d_model a multiple of 128), exact f32
    run_case(2, 8, 256, tol=1e-5)
    # bf16 output: sin evaluated in bf16 on v6e/v7x, f32 elsewhere
    run_case(2, 64, 32, x_dtype=jnp.bfloat16, tol=1e-1)

    print("KERNEL_OK")
</pallas_src>

<mosaic_0001>
module attributes {stable_mosaic.version = 11 : i64} {
  func.func @_packed_kernel(%arg0: i32, %arg1: memref<1x16xf32, #tpu.memory_space<vmem>>, %arg2: memref<16x512xf32, #tpu.memory_space<vmem>>, %arg3: memref<1x512xf32, #tpu.memory_space<vmem>>, %arg4: memref<1x512xf32, #tpu.memory_space<vmem>>) attributes {dimension_semantics = [#tpu.dimension_semantics<parallel>], iteration_bounds = array<i64: 1>, scalar_prefetch = 0 : i64, scratch_operands = 0 : i64, tpu.core_type = #tpu.core_type<tc>, window_params = [{transform_indices = @transform_0, window_bounds = array<i64: 1, 16>}, {pipeline_mode = #tpu.pipeline_mode<synchronous>, transform_indices = @transform_1, window_bounds = array<i64: 16, 512>}, {pipeline_mode = #tpu.pipeline_mode<synchronous>, transform_indices = @transform_2, window_bounds = array<i64: 1, 512>}, {transform_indices = @transform_3, window_bounds = array<i64: 1, 512>}]} {
    %c0 = arith.constant 0 : index
    %c0_0 = arith.constant 0 : index
    %0 = vector.load %arg1[%c0, %c0_0] : memref<1x16xf32, #tpu.memory_space<vmem>>, vector<1x16xf32>
    %c0_1 = arith.constant 0 : index
    %c0_2 = arith.constant 0 : index
    %1 = vector.load %arg2[%c0_1, %c0_2] : memref<16x512xf32, #tpu.memory_space<vmem>>, vector<16x512xf32>
    %cst = arith.constant dense<0.000000e+00> : vector<1x512xf32>
    %2 = tpu.matmul %0, %1, %cst {dimension_numbers = #tpu.dot_dimension_numbers<[1], [0], [0], [1], [0, 0, 1, 1], [], []>} : vector<1x16xf32>, vector<16x512xf32>, vector<1x512xf32> -> vector<1x512xf32>
    %c0_3 = arith.constant 0 : index
    %c0_4 = arith.constant 0 : index
    %3 = vector.load %arg3[%c0_3, %c0_4] : memref<1x512xf32, #tpu.memory_space<vmem>>, vector<1x512xf32>
    %4 = arith.addf %2, %3 : vector<1x512xf32>
    %5 = tpu.iota {dimensions = array<i32: 1>} : vector<1x512xi32>
    %c32_i32 = arith.constant 32 : i32
    %c0_i32 = arith.constant 0 : i32
    %6 = arith.cmpi eq, %c32_i32, %c0_i32 : i32
    %c1_i32 = arith.constant 1 : i32
    %7 = arith.select %6, %c1_i32, %c32_i32 : i32
    %8 = vector.broadcast %7 : i32 to vector<1x512xi32>
    %9 = arith.remsi %5, %8 : vector<1x512xi32>
    %c0_i32_5 = arith.constant 0 : i32
    %10 = vector.broadcast %c0_i32_5 : i32 to vector<1x512xi32>
    %11 = arith.cmpi ne, %9, %10 : vector<1x512xi32>
    %c0_i32_6 = arith.constant 0 : i32
    %12 = vector.broadcast %c0_i32_6 : i32 to vector<1x512xi32>
    %13 = arith.cmpi slt, %9, %12 : vector<1x512xi32>
    %c0_i32_7 = arith.constant 0 : i32
    %14 = arith.cmpi slt, %7, %c0_i32_7 : i32
    %15 = vector.broadcast %14 : i1 to vector<1x512xi1>
    %16 = vector.broadcast %15 : vector<1x512xi1> to vector<1x512xi1>
    %17 = arith.xori %13, %16 : vector<1x512xi1>
    %18 = arith.andi %17, %11 : vector<1x512xi1>
    %19 = vector.broadcast %7 : i32 to vector<1x512xi32>
    %20 = arith.addi %9, %19 : vector<1x512xi32>
    %21 = arith.select %18, %20, %9 : vector<1x512xi1>, vector<1x512xi32>
    %c0_i32_8 = arith.constant 0 : i32
    %22 = vector.broadcast %c0_i32_8 : i32 to vector<1x512xi32>
    %23 = arith.cmpi eq, %21, %22 : vector<1x512xi32>
    %24 = math.sin %4 : vector<1x512xf32>
    %25 = arith.select %23, %4, %24 : vector<1x512xi1>, vector<1x512xf32>
    %c0_9 = arith.constant 0 : index
    %c0_10 = arith.constant 0 : index
    %26 = vector.load %arg4[%c0_9, %c0_10] : memref<1x512xf32, #tpu.memory_space<vmem>>, vector<1x512xf32>
    tpu.vector_store %arg4[%c0_9, %c0_10], %25 {strides = array<i32>} : memref<1x512xf32, #tpu.memory_space<vmem>>, vector<1x512xf32>,
    return
  }
  func.func @transform_0(%arg0: i32) -> (i32, i32) {
    %c0_i32 = arith.constant 0 : i32
    %c0_i32_0 = arith.constant 0 : i32
    return %arg0, %c0_i32 : i32, i32
  }
  func.func @transform_1(%arg0: i32) -> (i32, i32) {
    %c0_i32 = arith.constant 0 : i32
    %c0_i32_0 = arith.constant 0 : i32
    %c0_i32_1 = arith.constant 0 : i32
    return %c0_i32, %c0_i32_0 : i32, i32
  }
  func.func @transform_2(%arg0: i32) -> (i32, i32) {
    %c0_i32 = arith.constant 0 : i32
    %c0_i32_0 = arith.constant 0 : i32
    %c0_i32_1 = arith.constant 0 : i32
    return %c0_i32, %c0_i32_0 : i32, i32
  }
  func.func @transform_3(%arg0: i32) -> (i32, i32) {
    %c0_i32 = arith.constant 0 : i32
    %c0_i32_0 = arith.constant 0 : i32
    return %arg0, %c0_i32 : i32, i32
  }
}

</mosaic_0001>

<llo_original>
// kernel: tile.9
$region0: #{tile.9}
  %s0 = inlined_call_operand.vmem [shape: f32[16,32], index: 0, kind: input, shape index: {}]
  %s1 = inlined_call_operand.vmem [shape: f32[1,512], index: 1, kind: output, shape index: {}]
  $region1: #{tile.9} parent=0
    #allocation0 [shape = 'u8[16384]{0}', space=vmem, size = 0x4000, scoped, tag = 'scoped mem for output reshape']
    %v2 = vld [vmem:[%s0] ss:$4 sm:$0xf]
    %vm3 = vcmask 261120
    %4 = vst.msk [vmem:[#allocation0] ss:$8 sm:$0xf] %vm3, %v2
    %s5 = scalar_lea.vmem %s0, 3
    %v6 = vld [vmem:[%s5] ss:$4 sm:$0xf]
    %7 = vrot.lane.b32.xlu0 %v6, 96
    %v8 = vpop.permute.xlu0 %7
    %vm9 = vcmask 1048320
    %10 = vst.msk [vmem:[#allocation0] ss:$8 sm:$0xf] %vm9, %v8
    %s11 = scalar_lea.vmem %s0, 2
    %v12 = vld [vmem:[%s11] ss:$4 sm:$0xf]
    %13 = vrot.lane.b32.xlu0 %v12, 64
    %v14 = vpop.permute.xlu0 %13
    %vm15 = vcmask 785920
    %16 = vst.msk [vmem:[#allocation0] ss:$8 sm:$0xf] %vm15, %v14
    %s17 = scalar_lea.vmem %s0, 1
    %v18 = vld [vmem:[%s17] ss:$4 sm:$0xf]
    %19 = vrot.lane.b32.xlu0 %v18, 32
    %v20 = vpop.permute.xlu0 %19
    %vm21 = vcmask 523520
    %22 = vst.msk [vmem:[#allocation0] ss:$8 sm:$0xf] %vm21, %v20
    %s24 = sshllo.u32 0, 1
    %v26 = vld [vmem:[#allocation0] sm:%s24]
    %s27 = sshllo.u32 0, 1
    %28 = vst [vmem:[%s1] sm:%s27] %v26
    %s29 = scalar_lea.vmem [#allocation0], 8
    %v30 = vld [vmem:[%s29] sm:%s24]
    %s31 = sshllo.u32 0, 1
    %s32 = scalar_lea.vmem %s1, 1
    %33 = vst [vmem:[%s32] sm:%s31] %v30
    %s34 = scalar_lea.vmem [#allocation0], 16
    %v35 = vld [vmem:[%s34] sm:%s24]
    %s36 = sshllo.u32 0, 1
    %s37 = smul.addr 1, 2
    %s38 = scalar_lea.vmem %s1, %s37
    %39 = vst [vmem:[%s38] sm:%s36] %v35
    %s40 = scalar_lea.vmem [#allocation0], 24
    %v41 = vld [vmem:[%s40] sm:%s24]
    %s42 = sshllo.u32 0, 1
    %s43 = smul.addr 1, 3
    %s44 = scalar_lea.vmem %s1, %s43
    %45 = vst [vmem:[%s44] sm:%s42] %v41

// kernel: _time_encoding_jit.1
$region0: #{_time_encoding_jit.1}
  #allocation0 [shape = 'u32[]', space=smem, size = 0x4, offset = 0x4, fixed_abs, tag = 'smem constant byte address 0x4 - core index']
  #allocation1 [shape = 'u32[144,128]{1,0:T(1,128)}', space=vmem, size = 0x12000, scoped, tag = 'internal scratch']
  %s0 = inlined_call_operand.vmem [shape: f32[1,16], index: 0, kind: input, shape index: {}]
  %s1 = inlined_call_operand.vmem [shape: f32[16,512], index: 1, kind: input, shape index: {}]
  %s2 = inlined_call_operand.vmem [shape: f32[1,512], index: 2, kind: input, shape index: {}]
  %s3 = inlined_call_operand.vmem [shape: f32[1,512], index: 3, kind: output, shape index: {}]
  %s4 = sld [smem:[#allocation0]]
  $region22: #{_time_encoding_jit.1} parent=0
    _
  %s6 = ssub.s32 1, %s4
  %s7 = scalar_select 0, %s6, %s4
  // Predicated region
  $region2: #{_time_encoding_jit.1} parent=0 // pred_check
    _
  $region3: #{_time_encoding_jit.1} parent=0 // pred_check_branch
    %9 = sbr.rel (0) target = $region5
  $region4: #{_time_encoding_jit.1} parent=0 // pred_region
    _
  $region5: #{_time_encoding_jit.1} parent=0 // pred_fallthru
    _
  // Predicated region
  $region6: #{_time_encoding_jit.1} parent=0 // pred_check
    _
  $region7: #{_time_encoding_jit.1} parent=0 // pred_check_branch
    %11 = sbr.rel (0) target = $region9
  $region8: #{_time_encoding_jit.1} parent=0 // pred_region
    _
  $region9: #{_time_encoding_jit.1} parent=0 // pred_fallthru
    _
  // Predicated region
  $region10: #{_time_encoding_jit.1} parent=0 // pred_check
    _
  $region11: #{_time_encoding_jit.1} parent=0 // pred_check_branch
    %13 = sbr.rel (0) target = $region13
  $region12: #{_time_encoding_jit.1} parent=0 // pred_region
    _
  $region13: #{_time_encoding_jit.1} parent=0 // pred_fallthru
    _
  %v14 = vld [vmem:[%s0] sm:$0x1]
  %v15 = vld [vmem:[%s1] sm:$0xff]
  %v16 = vld [vmem:[%s1 + $0x8] sm:$0xff]
  %v17 = vld [vmem:[%s1 + $0x10] sm:$0xff]
  %v18 = vld [vmem:[%s1 + $0x18] sm:$0xff]
  %v19 = vld [vmem:[%s1 + $0x20] sm:$0xff]
  %v20 = vld [vmem:[%s1 + $0x28] sm:$0xff]
  %v21 = vld [vmem:[%s1 + $0x30] sm:$0xff]
  %v22 = vld [vmem:[%s1 + $0x38] sm:$0xff]
  %v23 = vld [vmem:[%s2] sm:$0xf]
  %v25 = vlaneseq
  %v26 = vshrl.u32 %v25, 7
  %v27 = vsub.s32 0, %v26
  %v28 = vrot.slane %v23, %v27
  %v29 = vlaneseq
  %v30 = vshrl.u32 %v29, 7
  %v31 = vsub.s32 1, %v30
  %v32 = vrot.slane %v23, %v31
  %v33 = vlaneseq
  %v34 = vshrl.u32 %v33, 7
  %v35 = vsub.s32 2, %v34
  %v36 = vrot.slane %v23, %v35
  %v37 = vlaneseq
  %v38 = vshrl.u32 %v37, 7
  %v39 = vsub.s32 3, %v38
  %v40 = vrot.slane %v23, %v39
  %vm45 = vcmask 130048
  %v47 = vsel %vm45, %v14, 0
  %49 = vmatprep.subr.mxu0 %v16
  %50 = vmatpush1.msra.mxu0 %v15
  %51 = vmatprep.subr.mxu0 %v20
  %52 = vmatpush1.msra.mxu0 %v19
  %53 = vmatprep.subr.mxu0 0.0
  %54 = vmatpush1.msra.mxu0 0.0
  %55 = vmatprep.subr.mxu0 0.0
  %56 = vmatpush1.msra.mxu0 0.0
  %57 = vmatprep.subr.mxu0 0.0
  %58 = vmatpush1.msra.mxu0 0.0
  %59 = vmatprep.subr.mxu0 0.0
  %60 = vmatpush1.msra.mxu0 0.0
  %61 = vmatprep.subr.mxu0 0.0
  %62 = vmatpush1.msra.mxu0 0.0
  %63 = vmatprep.subr.mxu0 0.0
  %64 = vmatpush1.msra.mxu0 0.0
  %65 = vmatprep.subr.mxu0 0.0
  %66 = vmatpush1.msra.mxu0 0.0
  %67 = vmatprep.subr.mxu0 0.0
  %68 = vmatpush1.msra.mxu0 0.0
  %69 = vmatprep.subr.mxu0 0.0
  %70 = vmatpush1.msra.mxu0 0.0
  %71 = vmatprep.subr.mxu0 0.0
  %72 = vmatpush1.msra.mxu0 0.0
  %73 = vmatprep.subr.mxu0 0.0
  %74 = vmatpush1.msra.mxu0 0.0
  %75 = vmatprep.subr.mxu0 0.0
  %76 = vmatpush1.msra.mxu0 0.0
  %77 = vmatprep.subr.mxu0 0.0
  %78 = vmatpush1.msra.mxu0 0.0
  %79 = vmatprep.subr.mxu0 0.0
  %80 = vmatpush1.msra.mxu0 0.0
  %81 = vmatprep.subr.mxu0 0.0
  %82 = vmatpush1.msra.mxu0 0.0
  %83 = vmatprep.subr.mxu0 0.0
  %84 = vmatpush1.msra.mxu0 0.0
  %85 = vmatprep.subr.mxu0 0.0
  %86 = vmatpush1.msra.mxu0 0.0
  %87 = vmatprep.subr.mxu0 0.0
  %88 = vmatpush1.msra.mxu0 0.0
  %89 = vmatprep.subr.mxu0 0.0
  %90 = vmatpush1.msra.mxu0 0.0
  %91 = vmatprep.subr.mxu0 0.0
  %92 = vmatpush1.msra.mxu0 0.0
  %93 = vmatprep.subr.mxu0 0.0
  %94 = vmatpush1.msra.mxu0 0.0
  %95 = vmatprep.subr.mxu0 0.0
  %96 = vmatpush1.msra.mxu0 0.0
  %97 = vmatprep.subr.mxu0 0.0
  %98 = vmatpush1.msra.mxu0 0.0
  %99 = vmatprep.subr.mxu0 0.0
  %100 = vmatpush1.msra.mxu0 0.0
  %101 = vmatprep.subr.mxu0 0.0
  %102 = vmatpush1.msra.mxu0 0.0
  %103 = vmatprep.subr.mxu0 0.0
  %104 = vmatpush1.msra.mxu0 0.0
  %105 = vmatprep.subr.mxu0 0.0
  %106 = vmatpush1.msra.mxu0 0.0
  %107 = vmatprep.subr.mxu0 0.0
  %108 = vmatpush1.msra.mxu0 0.0
  %109 = vmatprep.subr.mxu0 0.0
  %110 = vmatpush1.msra.mxu0 0.0
  %111 = vmatprep.subr.mxu0 0.0
  %112 = vmatpush1.msra.mxu0 0.0
  %113 = vmatprep.mubr.f32.mxu0 0.0
  %114 = vmatmul.mubr.f32.gmra.mrb[0].mxu0 %v47
  %v115 = vpop.f32.mrb[0].mxu0
  %v116 = vadd.f32 %v28, %v115
  %v117 = vpop.f32.mrb[0].mxu0
  %v118 = vadd.f32 %v32, %v117
  %119 = vdwg.mxu0
  %120 = vmatprep.subr.mxu0 %v18
  %121 = vmatpush1.msra.mxu0 %v17
  %122 = vmatprep.subr.mxu0 %v22
  %123 = vmatpush1.msra.mxu0 %v21
  %124 = vmatprep.subr.mxu0 0.0
  %125 = vmatpush1.msra.mxu0 0.0
  %126 = vmatprep.subr.mxu0 0.0
  %127 = vmatpush1.msra.mxu0 0.0
  %128 = vmatprep.subr.mxu0 0.0
  %129 = vmatpush1.msra.mxu0 0.0
  %130 = vmatprep.subr.mxu0 0.0
  %131 = vmatpush1.msra.mxu0 0.0
  %132 = vmatprep.subr.mxu0 0.0
  %133 = vmatpush1.msra.mxu0 0.0
  %134 = vmatprep.subr.mxu0 0.0
  %135 = vmatpush1.msra.mxu0 0.0
  %136 = vmatprep.subr.mxu0 0.0
  %137 = vmatpush1.msra.mxu0 0.0
  %138 = vmatprep.subr.mxu0 0.0
  %139 = vmatpush1.msra.mxu0 0.0
  %140 = vmatprep.subr.mxu0 0.0
  %141 = vmatpush1.msra.mxu0 0.0
  %142 = vmatprep.subr.mxu0 0.0
  %143 = vmatpush1.msra.mxu0 0.0
  %144 = vmatprep.subr.mxu0 0.0
  %145 = vmatpush1.msra.mxu0 0.0
  %146 = vmatprep.subr.mxu0 0.0
  %147 = vmatpush1.msra.mxu0 0.0
  %148 = vmatprep.subr.mxu0 0.0
  %149 = vmatpush1.msra.mxu0 0.0
  %150 = vmatprep.subr.mxu0 0.0
  %151 = vmatpush1.msra.mxu0 0.0
  %152 = vmatprep.subr.mxu0 0.0
  %153 = vmatpush1.msra.mxu0 0.0
  %154 = vmatprep.subr.mxu0 0.0
  %155 = vmatpush1.msra.mxu0 0.0
  %156 = vmatprep.subr.mxu0 0.0
  %157 = vmatpush1.msra.mxu0 0.0
  %158 = vmatprep.subr.mxu0 0.0
  %159 = vmatpush1.msra.mxu0 0.0
  %160 = vmatprep.subr.mxu0 0.0
  %161 = vmatpush1.msra.mxu0 0.0
  %162 = vmatprep.subr.mxu0 0.0
  %163 = vmatpush1.msra.mxu0 0.0
  %164 = vmatprep.subr.mxu0 0.0
  %165 = vmatpush1.msra.mxu0 0.0
  %166 = vmatprep.subr.mxu0 0.0
  %167 = vmatpush1.msra.mxu0 0.0
  %168 = vmatprep.subr.mxu0 0.0
  %169 = vmatpush1.msra.mxu0 0.0
  %170 = vmatprep.subr.mxu0 0.0
  %171 = vmatpush1.msra.mxu0 0.0
  %172 = vmatprep.subr.mxu0 0.0
  %173 = vmatpush1.msra.mxu0 0.0
  %174 = vmatprep.subr.mxu0 0.0
  %175 = vmatpush1.msra.mxu0 0.0
  %176 = vmatprep.subr.mxu0 0.0
  %177 = vmatpush1.msra.mxu0 0.0
  %178 = vmatprep.subr.mxu0 0.0
  %179 = vmatpush1.msra.mxu0 0.0
  %180 = vmatprep.subr.mxu0 0.0
  %181 = vmatpush1.msra.mxu0 0.0
  %182 = vmatprep.subr.mxu0 0.0
  %183 = vmatpush1.msra.mxu0 0.0
  %184 = vmatprep.mubr.f32.mxu0 0.0
  %185 = vmatmul.mubr.f32.gmra.mrb[0].mxu0 %v47
  %v186 = vpop.f32.mrb[0].mxu0
  %v187 = vadd.f32 %v36, %v186
  %v188 = vpop.f32.mrb[0].mxu0
  %v189 = vadd.f32 %v40, %v188
  %190 = vdwg.mxu0
  %v191 = vlaneseq
  %v192 = vand.u32 %v191, 127
  %v193 = vadd.s32 %v192, 128
  %v194 = vadd.s32 %v192, 256
  %v195 = vadd.s32 %v192, 384
  %vm196 = vcmp.lt.s32.totalorder %v192, 0
  %v197 = vsub.s32 0, %v192
  %v198 = vsel %vm196, %v197, %v192
  %v199 = vshrl.u32 %v198, 5
  %v200 = vand.u32 %v198, 31
  %v201 = vsub.s32 0, %v200
  %v202 = vsel %vm196, %v201, %v200
  %vm203 = vcmp.lt.s32.totalorder %v193, 0
  %v204 = vsub.s32 0, %v193
  %v205 = vsel %vm203, %v204, %v193
  %v206 = vshrl.u32 %v205, 5
  %v207 = vand.u32 %v205, 31
  %v208 = vsub.s32 0, %v207
  %v209 = vsel %vm203, %v208, %v207
  %vm210 = vcmp.lt.s32.totalorder %v194, 0
  %v211 = vsub.s32 0, %v194
  %v212 = vsel %vm210, %v211, %v194
  %v213 = vshrl.u32 %v212, 5
  %v214 = vand.u32 %v212, 31
  %v215 = vsub.s32 0, %v214
  %v216 = vsel %vm210, %v215, %v214
  %vm217 = vcmp.lt.s32.totalorder %v195, 0
  %v218 = vsub.s32 0, %v195
  %v219 = vsel %vm217, %v218, %v195
  %v220 = vshrl.u32 %v219, 5
  %v221 = vand.u32 %v219, 31
  %v222 = vsub.s32 0, %v221
  %v223 = vsel %vm217, %v222, %v221
  %vm224 = vcmp.ne.s32.totalorder %v202, 0
  %vm225 = vcmp.ne.s32.totalorder %v209, 0
  %vm226 = vcmp.ne.s32.totalorder %v216, 0
  %vm227 = vcmp.ne.s32.totalorder %v223, 0
  %vm228 = vcmp.lt.s32.totalorder %v202, 0
  %vm229 = vcmp.lt.s32.totalorder %v209, 0
  %vm230 = vcmp.lt.s32.totalorder %v216, 0
  %vm231 = vcmp.lt.s32.totalorder %v223, 0
  %vm232 = vmand %vm228, %vm224
  %vm233 = vmand %vm229, %vm225
  %vm234 = vmand %vm230, %vm226
  %vm235 = vmand %vm231, %vm227
  %v236 = vadd.s32 %v202, 32
  %v237 = vadd.s32 %v209, 32
  %v238 = vadd.s32 %v216, 32
  %v239 = vadd.s32 %v223, 32
  %v240 = vsel %vm232, %v236, %v202
  %v241 = vsel %vm233, %v237, %v209
  %v242 = vsel %vm234, %v238, %v216
  %v243 = vsel %vm235, %v239, %v223
  %vm244 = vcmp.eq.s32.totalorder %v240, 0
  %vm245 = vcmp.eq.s32.totalorder %v241, 0
  %vm246 = vcmp.eq.s32.totalorder %v242, 0
  %vm247 = vcmp.eq.s32.totalorder %v243, 0
  %v248 = vand.u32 2147483647, %v116
  %vm249 = vcmp.le.f32.partialorder %v248, 0.7853982
  %vm250 = vcmp.lt.s32.totalorder %v116, 0
  %v251 = vand.u32 %v116, 2139095040
  %v252 = vshrl.u32 %v251, 23
  %v253 = vsub.s32 %v252, 127
  %v254 = vand.u32 2147483647, %v116
  %v255 = vand.u32 %v254, 8388607
  %v256 = vor.u32 %v255, 8388608
  %v257 = vsub.s32 0, %v256
  %v258 = vadd.s32 %v253, 1
  %vm259 = vcmp.gt.s32.totalorder %v258, 0
  %v260 = vsel %vm259, %v258, 0
  %v261 = vshrl.u32 %v260, 5
  %v262 = vand.u32 %v260, 31
  %v263 = vsub.s32 32, %v262
  %v264 = vshrl.u32 683565275, %v263
  %v265 = vshll.u32 683565275, %v262
  %v266 = vshrl.u32 2475754826, %v263
  %v267 = vor.u32 %v265, %v266
  %v268 = vshll.u32 2475754826, %v262
  %v269 = vshrl.u32 2131351028, %v263
  %v270 = vor.u32 %v268, %v269
  %v271 = vshll.u32 2131351028, %v262
  %v272 = vshrl.u32 2102212464, %v263
  %v273 = vor.u32 %v271, %v272
  %v274 = vshll.u32 2102212464, %v262
  %v275 = vshrl.u32 920167782, %v263
  %v276 = vor.u32 %v274, %v275
  %v277 = vshll.u32 920167782, %v262
  %v278 = vshrl.u32 1326507024, %v263
  %v279 = vor.u32 %v277, %v278
  %vm280 = vcmp.lt.s32.totalorder %v261, 1
  %vm281 = vcmp.lt.s32.totalorder %v261, 2
  %vm282 = vcmp.lt.s32.totalorder %v261, 3
  %vm283 = vcmp.lt.s32.totalorder %v261, 4
  %v284 = vsel %vm280, %v264, %v267
  %v285 = vsel %vm283, %v273, 2102212464
  %v286 = vsel %vm282, %v270, %v285
  %v287 = vsel %vm281, %v284, %v286
  %v288 = vsel %vm280, %v267, %v270
  %v289 = vsel %vm283, %v276, 920167782
  %v290 = vsel %vm282, %v273, %v289
  %v291 = vsel %vm281, %v288, %v290
  %v292 = vsel %vm280, %v270, %v273
  %v293 = vsel %vm283, %v279, 1326507024
  %v294 = vsel %vm282, %v276, %v293
  %v295 = vsel %vm281, %v292, %v294
  %v296 = vshll.u32 %v256, 8
  %v297 = vmul.u32.u64.compose %v296, %v295
  %v298 = vextract.low.u32 %v297
  %v299 = vextract.high.u32 %v297
  %v300 = vmul.u32.u64.compose %v296, %v291
  %v301 = vextract.low.u32 %v300
  %v302 = vextract.high.u32 %v300
  %v303 = vmul.u32 %v296, %v287
  %v304 = vadd.s32 %v299, %v301
  %vm305 = vc.u32 %v299, %v301
  %v306 = vadd.s32 %v302, 1
  %v307 = vsel %vm305, %v306, %v302
  %v308 = vadd.s32 %v303, %v307
  %v309 = vadd.s32 %v308, 536870912
  %v310 = vshrl.u32 %v309, 30
  %v311 = vshll.u32 %v310, 30
  %v312 = vsub.s32 %v308, %v311
  %vm313 = vcmp.lt.s32.totalorder %v312, 0
  %v314 = vsub.s32 0, %v312
  %v315 = vsel %vm313, %v314, %v312
  %v316 = vclz %v315
  %v317 = vsub.s32 %v316, 2
  %vm318 = vcmp.gt.s32.totalorder 0, %v317
  %v319 = vsel %vm318, 0, %v317
  %v320 = vsub.s32 32, %v319
  %v321 = vshll.u32 %v312, %v319
  %v322 = vshrl.u32 %v304, %v320
  %v323 = vor.u32 %v321, %v322
  %v324 = vsub.s32 4294967266, %v319
  %v325 = vadd.s32 %v324, 127
  %v326 = vshll.u32 %v325, 23
  %v327 = vor.u32 4788187, %v326
  %v328 = vand.u32 2147483647, %v327
  %v330 = vcvt.s32.f32 %v323
  %v331 = vmul.f32 %v330, %v328
  %v332 = vxor.u32 %v331, 2147483648
  %v333 = vsel %vm250, %v332, %v331
  %v334 = vsub.s32 4, %v310
  %v335 = vsel %vm250, %v334, %v310
  %v336 = vsel %vm249, %v116, %v333
  %v337 = vsel %vm249, 0, %v335
  %v338 = vcosq.f32.pop %v336
  %v339 = vsinq.f32.pop %v336
  %vm340 = vweird.f32 %v116
  %v341 = vadd.s32 %v337, 3
  %v342 = vand.u32 %v341, 3
  %vm343 = vcmp.lt.s32.totalorder %v342, 2
  %vm344 = vcmp.eq.s32.totalorder %v342, 0
  %v345 = vxor.u32 %v339, 2147483648
  %v346 = vsel %vm344, %v338, %v345
  %vm347 = vcmp.eq.s32.totalorder %v342, 2
  %v348 = vxor.u32 %v338, 2147483648
  %v349 = vsel %vm347, %v348, %v339
  %v350 = vsel %vm343, %v346, %v349
  %v351 = vsel %vm340, nan, %v350
  %v352 = vand.u32 2147483647, %v118
  %vm353 = vcmp.le.f32.partialorder %v352, 0.7853982
  %vm354 = vcmp.lt.s32.totalorder %v118, 0
  %v355 = vand.u32 %v118, 2139095040
  %v356 = vshrl.u32 %v355, 23
  %v357 = vsub.s32 %v356, 127
  %v358 = vand.u32 2147483647, %v118
  %v359 = vand.u32 %v358, 8388607
  %v360 = vor.u32 %v359, 8388608
  %v361 = vsub.s32 0, %v360
  %v362 = vadd.s32 %v357, 1
  %vm363 = vcmp.gt.s32.totalorder %v362, 0
  %v364 = vsel %vm363, %v362, 0
  %v365 = vshrl.u32 %v364, 5
  %v366 = vand.u32 %v364, 31
  %v367 = vsub.s32 32, %v366
  %v368 = vshrl.u32 683565275, %v367
  %v369 = vshll.u32 683565275, %v366
  %v370 = vshrl.u32 2475754826, %v367
  %v371 = vor.u32 %v369, %v370
  %v372 = vshll.u32 2475754826, %v366
  %v373 = vshrl.u32 2131351028, %v367
  %v374 = vor.u32 %v372, %v373
  %v375 = vshll.u32 2131351028, %v366
  %v376 = vshrl.u32 2102212464, %v367
  %v377 = vor.u32 %v375, %v376
  %v378 = vshll.u32 2102212464, %v366
  %v379 = vshrl.u32 920167782, %v367
  %v380 = vor.u32 %v378, %v379
  %v381 = vshll.u32 920167782, %v366
  %v382 = vshrl.u32 1326507024, %v367
  %v383 = vor.u32 %v381, %v382
  %vm384 = vcmp.lt.s32.totalorder %v365, 1
  %vm385 = vcmp.lt.s32.totalorder %v365, 2
  %vm386 = vcmp.lt.s32.totalorder %v365, 3
  %vm387 = vcmp.lt.s32.totalorder %v365, 4
  %v388 = vsel %vm384, %v368, %v371
  %v389 = vsel %vm387, %v377, 2102212464
  %v390 = vsel %vm386, %v374, %v389
  %v391 = vsel %vm385, %v388, %v390
  %v392 = vsel %vm384, %v371, %v374
  %v393 = vsel %vm387, %v380, 920167782
  %v394 = vsel %vm386, %v377, %v393
  %v395 = vsel %vm385, %v392, %v394
  %v396 = vsel %vm384, %v374, %v377
  %v397 = vsel %vm387, %v383, 1326507024
  %v398 = vsel %vm386, %v380, %v397
  %v399 = vsel %vm385, %v396, %v398
  %v400 = vshll.u32 %v360, 8
  %v401 = vmul.u32.u64.compose %v400, %v399
  %v402 = vextract.low.u32 %v401
  %v403 = vextract.high.u32 %v401
  %v404 = vmul.u32.u64.compose %v400, %v395
  %v405 = vextract.low.u32 %v404
  %v406 = vextract.high.u32 %v404
  %v407 = vmul.u32 %v400, %v391
  %v408 = vadd.s32 %v403, %v405
  %vm409 = vc.u32 %v403, %v405
  %v410 = vadd.s32 %v406, 1
  %v411 = vsel %vm409, %v410, %v406
  %v412 = vadd.s32 %v407, %v411
  %v413 = vadd.s32 %v412, 536870912
  %v414 = vshrl.u32 %v413, 30
  %v415 = vshll.u32 %v414, 30
  %v416 = vsub.s32 %v412, %v415
  %vm417 = vcmp.lt.s32.totalorder %v416, 0
  %v418 = vsub.s32 0, %v416
  %v419 = vsel %vm417, %v418, %v416
  %v420 = vclz %v419
  %v421 = vsub.s32 %v420, 2
  %vm422 = vcmp.gt.s32.totalorder 0, %v421
  %v423 = vsel %vm422, 0, %v421
  %v424 = vsub.s32 32, %v423
  %v425 = vshll.u32 %v416, %v423
  %v426 = vshrl.u32 %v408, %v424
  %v427 = vor.u32 %v425, %v426
  %v428 = vsub.s32 4294967266, %v423
  %v429 = vadd.s32 %v428, 127
  %v430 = vshll.u32 %v429, 23
  %v431 = vor.u32 4788187, %v430
  %v432 = vand.u32 2147483647, %v431
  %v434 = vcvt.s32.f32 %v427
  %v435 = vmul.f32 %v434, %v432
  %v436 = vxor.u32 %v435, 2147483648
  %v437 = vsel %vm354, %v436, %v435
  %v438 = vsub.s32 4, %v414
  %v439 = vsel %vm354, %v438, %v414
  %v440 = vsel %vm353, %v118, %v437
  %v441 = vsel %vm353, 0, %v439
  %v442 = vcosq.f32.pop %v440
  %v443 = vsinq.f32.pop %v440
  %vm444 = vweird.f32 %v118
  %v445 = vadd.s32 %v441, 3
  %v446 = vand.u32 %v445, 3
  %vm447 = vcmp.lt.s32.totalorder %v446, 2
  %vm448 = vcmp.eq.s32.totalorder %v446, 0
  %v449 = vxor.u32 %v443, 2147483648
  %v450 = vsel %vm448, %v442, %v449
  %vm451 = vcmp.eq.s32.totalorder %v446, 2
  %v452 = vxor.u32 %v442, 2147483648
  %v453 = vsel %vm451, %v452, %v443
  %v454 = vsel %vm447, %v450, %v453
  %v455 = vsel %vm444, nan, %v454
  %v456 = vand.u32 2147483647, %v187
  %vm457 = vcmp.le.f32.partialorder %v456, 0.7853982
  %vm458 = vcmp.lt.s32.totalorder %v187, 0
  %v459 = vand.u32 %v187, 2139095040
  %v460 = vshrl.u32 %v459, 23
  %v461 = vsub.s32 %v460, 127
  %v462 = vand.u32 2147483647, %v187
  %v463 = vand.u32 %v462, 8388607
  %v464 = vor.u32 %v463, 8388608
  %v465 = vsub.s32 0, %v464
  %v466 = vadd.s32 %v461, 1
  %vm467 = vcmp.gt.s32.totalorder %v466, 0
  %v468 = vsel %vm467, %v466, 0
  %v469 = vshrl.u32 %v468, 5
  %v470 = vand.u32 %v468, 31
  %v471 = vsub.s32 32, %v470
  %v472 = vshrl.u32 683565275, %v471
  %v473 = vshll.u32 683565275, %v470
  %v474 = vshrl.u32 2475754826, %v471
  %v475 = vor.u32 %v473, %v474
  %v476 = vshll.u32 2475754826, %v470
  %v477 = vshrl.u32 2131351028, %v471
  %v478 = vor.u32 %v476, %v477
  %v479 = vshll.u32 2131351028, %v470
  %v480 = vshrl.u32 2102212464, %v471
  %v481 = vor.u32 %v479, %v480
  %v482 = vshll.u32 2102212464, %v470
  %v483 = vshrl.u32 920167782, %v471
  %v484 = vor.u32 %v482, %v483
  %v485 = vshll.u32 920167782, %v470
  %v486 = vshrl.u32 1326507024, %v471
  %v487 = vor.u32 %v485, %v486
  %vm488 = vcmp.lt.s32.totalorder %v469, 1
  %vm489 = vcmp.lt.s32.totalorder %v469, 2
  %vm490 = vcmp.lt.s32.totalorder %v469, 3
  %vm491 = vcmp.lt.s32.totalorder %v469, 4
  %v492 = vsel %vm488, %v472, %v475
  %v493 = vsel %vm491, %v481, 2102212464
  %v494 = vsel %vm490, %v478, %v493
  %v495 = vsel %vm489, %v492, %v494
  %v496 = vsel %vm488, %v475, %v478
  %v497 = vsel %vm491, %v484, 920167782
  %v498 = vsel %vm490, %v481, %v497
  %v499 = vsel %vm489, %v496, %v498
  %v500 = vsel %vm488, %v478, %v481
  %v501 = vsel %vm491, %v487, 1326507024
  %v502 = vsel %vm490, %v484, %v501
  %v503 = vsel %vm489, %v500, %v502
  %v504 = vshll.u32 %v464, 8
  %v505 = vmul.u32.u64.compose %v504, %v503
  %v506 = vextract.low.u32 %v505
  %v507 = vextract.high.u32 %v505
  %v508 = vmul.u32.u64.compose %v504, %v499
  %v509 = vextract.low.u32 %v508
  %v510 = vextract.high.u32 %v508
  %v511 = vmul.u32 %v504, %v495
  %v512 = vadd.s32 %v507, %v509
  %vm513 = vc.u32 %v507, %v509
  %v514 = vadd.s32 %v510, 1
  %v515 = vsel %vm513, %v514, %v510
  %v516 = vadd.s32 %v511, %v515
  %v517 = vadd.s32 %v516, 536870912
  %v518 = vshrl.u32 %v517, 30
  %v519 = vshll.u32 %v518, 30
  %v520 = vsub.s32 %v516, %v519
  %vm521 = vcmp.lt.s32.totalorder %v520, 0
  %v522 = vsub.s32 0, %v520
  %v523 = vsel %vm521, %v522, %v520
  %v524 = vclz %v523
  %v525 = vsub.s32 %v524, 2
  %vm526 = vcmp.gt.s32.totalorder 0, %v525
  %v527 = vsel %vm526, 0, %v525
  %v528 = vsub.s32 32, %v527
  %v529 = vshll.u32 %v520, %v527
  %v530 = vshrl.u32 %v512, %v528
  %v531 = vor.u32 %v529, %v530
  %v532 = vsub.s32 4294967266, %v527
  %v533 = vadd.s32 %v532, 127
  %v534 = vshll.u32 %v533, 23
  %v535 = vor.u32 4788187, %v534
  %v536 = vand.u32 2147483647, %v535
  %v538 = vcvt.s32.f32 %v531
  %v539 = vmul.f32 %v538, %v536
  %v540 = vxor.u32 %v539, 2147483648
  %v541 = vsel %vm458, %v540, %v539
  %v542 = vsub.s32 4, %v518
  %v543 = vsel %vm458, %v542, %v518
  %v544 = vsel %vm457, %v187, %v541
  %v545 = vsel %vm457, 0, %v543
  %v546 = vcosq.f32.pop %v544
  %v547 = vsinq.f32.pop %v544
  %vm548 = vweird.f32 %v187
  %v549 = vadd.s32 %v545, 3
  %v550 = vand.u32 %v549, 3
  %vm551 = vcmp.lt.s32.totalorder %v550, 2
  %vm552 = vcmp.eq.s32.totalorder %v550, 0
  %v553 = vxor.u32 %v547, 2147483648
  %v554 = vsel %vm552, %v546, %v553
  %vm555 = vcmp.eq.s32.totalorder %v550, 2
  %v556 = vxor.u32 %v546, 2147483648
  %v557 = vsel %vm555, %v556, %v547
  %v558 = vsel %vm551, %v554, %v557
  %v559 = vsel %vm548, nan, %v558
  %v560 = vand.u32 2147483647, %v189
  %vm561 = vcmp.le.f32.partialorder %v560, 0.7853982
  %vm562 = vcmp.lt.s32.totalorder %v189, 0
  %v563 = vand.u32 %v189, 2139095040
  %v564 = vshrl.u32 %v563, 23
  %v565 = vsub.s32 %v564, 127
  %v566 = vand.u32 2147483647, %v189
  %v567 = vand.u32 %v566, 8388607
  %v568 = vor.u32 %v567, 8388608
  %v569 = vsub.s32 0, %v568
  %v570 = vadd.s32 %v565, 1
  %vm571 = vcmp.gt.s32.totalorder %v570, 0
  %v572 = vsel %vm571, %v570, 0
  %v573 = vshrl.u32 %v572, 5
  %v574 = vand.u32 %v572, 31
  %v575 = vsub.s32 32, %v574
  %v576 = vshrl.u32 683565275, %v575
  %v577 = vshll.u32 683565275, %v574
  %v578 = vshrl.u32 2475754826, %v575
  %v579 = vor.u32 %v577, %v578
  %v580 = vshll.u32 2475754826, %v574
  %v581 = vshrl.u32 2131351028, %v575
  %v582 = vor.u32 %v580, %v581
  %v583 = vshll.u32 2131351028, %v574
  %v584 = vshrl.u32 2102212464, %v575
  %v585 = vor.u32 %v583, %v584
  %v586 = vshll.u32 2102212464, %v574
  %v587 = vshrl.u32 920167782, %v575
  %v588 = vor.u32 %v586, %v587
  %v589 = vshll.u32 920167782, %v574
  %v590 = vshrl.u32 1326507024, %v575
  %v591 = vor.u32 %v589, %v590
  %vm592 = vcmp.lt.s32.totalorder %v573, 1
  %vm593 = vcmp.lt.s32.totalorder %v573, 2
  %vm594 = vcmp.lt.s32.totalorder %v573, 3
  %vm595 = vcmp.lt.s32.totalorder %v573, 4
  %v596 = vsel %vm592, %v576, %v579
  %v597 = vsel %vm595, %v585, 2102212464
  %v598 = vsel %vm594, %v582, %v597
  %v599 = vsel %vm593, %v596, %v598
  %v600 = vsel %vm592, %v579, %v582
  %v601 = vsel %vm595, %v588, 920167782
  %v602 = vsel %vm594, %v585, %v601
  %v603 = vsel %vm593, %v600, %v602
  %v604 = vsel %vm592, %v582, %v585
  %v605 = vsel %vm595, %v591, 1326507024
  %v606 = vsel %vm594, %v588, %v605
  %v607 = vsel %vm593, %v604, %v606
  %v608 = vshll.u32 %v568, 8
  %v609 = vmul.u32.u64.compose %v608, %v607
  %v610 = vextract.low.u32 %v609
  %v611 = vextract.high.u32 %v609
  %v612 = vmul.u32.u64.compose %v608, %v603
  %v613 = vextract.low.u32 %v612
  %v614 = vextract.high.u32 %v612
  %v615 = vmul.u32 %v608, %v599
  %v616 = vadd.s32 %v611, %v613
  %vm617 = vc.u32 %v611, %v613
  %v618 = vadd.s32 %v614, 1
  %v619 = vsel %vm617, %v618, %v614
  %v620 = vadd.s32 %v615, %v619
  %v621 = vadd.s32 %v620, 536870912
  %v622 = vshrl.u32 %v621, 30
  %v623 = vshll.u32 %v622, 30
  %v624 = vsub.s32 %v620, %v623
  %vm625 = vcmp.lt.s32.totalorder %v624, 0
  %v626 = vsub.s32 0, %v624
  %v627 = vsel %vm625, %v626, %v624
  %v628 = vclz %v627
  %v629 = vsub.s32 %v628, 2
  %vm630 = vcmp.gt.s32.totalorder 0, %v629
  %v631 = vsel %vm630, 0, %v629
  %v632 = vsub.s32 32, %v631
  %v633 = vshll.u32 %v624, %v631
  %v634 = vshrl.u32 %v616, %v632
  %v635 = vor.u32 %v633, %v634
  %v636 = vsub.s32 4294967266, %v631
  %v637 = vadd.s32 %v636, 127
  %v638 = vshll.u32 %v637, 23
  %v639 = vor.u32 4788187, %v638
  %v640 = vand.u32 2147483647, %v639
  %v642 = vcvt.s32.f32 %v635
  %v643 = vmul.f32 %v642, %v640
  %v644 = vxor.u32 %v643, 2147483648
  %v645 = vsel %vm562, %v644, %v643
  %v646 = vsub.s32 4, %v622
  %v647 = vsel %vm562, %v646, %v622
  %v648 = vsel %vm561, %v189, %v645
  %v649 = vsel %vm561, 0, %v647
  %v650 = vcosq.f32.pop %v648
  %v651 = vsinq.f32.pop %v648
  %vm652 = vweird.f32 %v189
  %v653 = vadd.s32 %v649, 3
  %v654 = vand.u32 %v653, 3
  %vm655 = vcmp.lt.s32.totalorder %v654, 2
  %vm656 = vcmp.eq.s32.totalorder %v654, 0
  %v657 = vxor.u32 %v651, 2147483648
  %v658 = vsel %vm656, %v650, %v657
  %vm659 = vcmp.eq.s32.totalorder %v654, 2
  %v660 = vxor.u32 %v650, 2147483648
  %v661 = vsel %vm659, %v660, %v651
  %v662 = vsel %vm655, %v658, %v661
  %v663 = vsel %vm652, nan, %v662
  %v664 = vsel %vm244, %v116, %v351
  %v665 = vsel %vm245, %v118, %v455
  %v666 = vsel %vm246, %v187, %v559
  %v667 = vsel %vm247, %v189, %v663
  %v672 = vcombine.low %v664, %v665
  %v673 = vcombine.low %v666, %v667
  %v675 = vunpack.c.l.s4 1966171168
  %v676 = vunpack.c.0.s8 %v675
  %v677 = vlaneseq
  %v678 = vshrl.u32 %v677, 7
  %v679 = vsub.s32 %v676, %v678
  %v680 = vrot.slane %v672, %v679
  %v682 = vunpack.c.l.s4 1966171168
  %v683 = vunpack.c.0.s8 %v682
  %v684 = vlaneseq
  %v685 = vshrl.u32 %v684, 7
  %v686 = vsub.s32 %v683, %v685
  %v687 = vrot.slane %v673, %v686
  %v688 = vcombine.low %v680, %v687
  %v690 = vunpack.c.l.s4 1966171168
  %v691 = vunpack.c.0.s8 %v690
  %v692 = vlaneseq
  %v693 = vshrl.u32 %v692, 7
  %v694 = vsub.s32 %v691, %v693
  %v695 = vrot.slane %v688, %v694
  %v697 = vlaneseq
  %vm698 = vcmp.ge.s32.totalorder %v697, 0
  %vm699 = vcmp.lt.s32.totalorder %v697, 512
  %vm700 = vmand %vm698, %vm699
  %701 = vst.msk [vmem:[%s3] sm:$0xf] %vm700, %v695
  // Predicated region
  $region14: #{_time_encoding_jit.1} parent=0 // pred_check
    _
  $region15: #{_time_encoding_jit.1} parent=0 // pred_check_branch
    %703 = sbr.rel (0) target = $region17
  $region16: #{_time_encoding_jit.1} parent=0 // pred_region
    _
  $region17: #{_time_encoding_jit.1} parent=0 // pred_fallthru
    _
  // Predicated region
  $region18: #{_time_encoding_jit.1} parent=0 // pred_check
    _
  $region19: #{_time_encoding_jit.1} parent=0 // pred_check_branch
    %705 = sbr.rel (0) target = $region21
  $region20: #{_time_encoding_jit.1} parent=0 // pred_region
    _
  $region21: #{_time_encoding_jit.1} parent=0 // pred_fallthru
    _

</llo_original>
